<compile_context>
chip_gen: v7x
topology: tpu7x:2x2x1
jax: 0.10.0
libtpu: 0.0.40
codegen_flags: <defaults>
</compile_context>

<pallas_src>
import jax
import jax.numpy as jnp
from jax.experimental import pallas as pl
from jax.experimental.pallas import tpu as pltpu


def _dsconv_kernel(x_ref, b_ref, o_ref):
    # x_ref: (M, Kp)   kh-im2col'd lane-dense input rows (batch merged into M)
    # b_ref: (Kp, NO)  fused banded depthwise x pointwise weights (NO = Wo*Cout)
    # o_ref: (M, NO)   lane-dense output rows
    o_ref[...] = jnp.dot(x_ref[...], b_ref[...],
                         preferred_element_type=jnp.float32).astype(o_ref.dtype)


class DepthwiseSeparableConv2d:
    """Pallas port of the PyTorch module (bias=False)."""

    def __init__(self, dw_weight, pw_weight, *, stride=1, padding=1):
        # dw_weight: (C, 1, KH, KW)   pw_weight: (Cout, C, 1, 1)
        assert stride == 1  # TODO(synk): stride > 1 (strided row windows + stride*C band step)
        self.dw_weight = dw_weight
        self.pw_weight = pw_weight
        self.stride = stride
        self.padding = padding
        self._cache = {}  # (H, W, dtype) -> (b_mat, jitted forward)

    # ---- one-time (per spatial shape) weight fusion: hoisted out of forward ----
    def _build(self, H, W, dtype):
        C = self.dw_weight.shape[0]
        KH, KW = self.dw_weight.shape[2], self.dw_weight.shape[3]
        Cout = self.pw_weight.shape[0]
        pad = self.padding
        Hp, Wp = H + 2 * pad, W + 2 * pad
        Ho, Wo = Hp - KH + 1, Wp - KW + 1
        L = Wp * C                        # lane-dense padded input row length
        S = KW * C                        # taps per output position along W
        K = KH * L                        # folded contraction length (216)
        Kp = ((K + 127) // 128) * 128     # pad contraction to a lane multiple (256)
        NO = Wo * Cout                    # lane-dense output row length (1024)

        # Fused depthwise x pointwise tap weights: wf[kh, kw*C + c, j] = dw*pw.
        dw = jnp.transpose(self.dw_weight[:, 0, :, :], (1, 2, 0))         # (KH, KW, C)
        pw = jnp.transpose(self.pw_weight[:, :, 0, 0], (1, 0))            # (C, Cout)
        wf = (dw[:, :, :, None] * pw[None, None, :, :]).reshape(KH, S, Cout)

        # Banded block-Toeplitz over the W axis, flattened over kh:
        #   B[kh*L + wl, w*Cout + j] = wf[kh, wl - w*C, j]  if 0 <= wl - w*C < S
        r = jnp.arange(L)[None, :]                                        # (1, L)
        w_idx = jnp.arange(Wo)[:, None]                                   # (Wo, 1)
        rel = r - w_idx * C                                               # (Wo, L)
        valid = (rel >= 0) & (rel < S)
        gathered = wf[:, jnp.clip(rel, 0, S - 1), :]                      # (KH, Wo, L, Cout)
        banded = jnp.where(valid[None, :, :, None], gathered, 0.0)
        b_mat = jnp.transpose(banded, (0, 2, 1, 3)).reshape(K, NO)
        b_mat = jnp.pad(b_mat, ((0, Kp - K), (0, 0))).astype(dtype)       # (Kp, NO)
        b_mat = jax.block_until_ready(b_mat)   # materialize once, off the hot path

        def forward(x_nchw, b):
            N = x_nchw.shape[0]
            M = N * Ho
            x_nhwc = jnp.transpose(x_nchw, (0, 2, 3, 1))                  # (N, H, W, C)
            x_pad = jnp.pad(x_nhwc, ((0, 0), (pad, pad), (pad, pad), (0, 0)))
            x_lane = x_pad.reshape(N, Hp, L)                              # (N, Hp, Wp*C)
            # kh-im2col: KH shifted row windows concatenated on the lane axis.
            xi = jnp.concatenate(
                [x_lane[:, kh:kh + Ho, :] for kh in range(KH)], axis=-1)  # (N, Ho, K)
            xi = jnp.pad(xi, ((0, 0), (0, 0), (0, Kp - K)))               # (N, Ho, Kp)
            xi = xi.reshape(M, Kp)

            # Single grid step: everything fits in VMEM (~1.2 MiB), one MXU matmul.
            out = pl.pallas_call(
                _dsconv_kernel,
                out_shape=jax.ShapeDtypeStruct((M, NO), x_nchw.dtype),
                in_specs=[
                    pl.BlockSpec(memory_space=pltpu.MemorySpace.VMEM),
                    pl.BlockSpec(memory_space=pltpu.MemorySpace.VMEM),
                ],
                out_specs=pl.BlockSpec(memory_space=pltpu.MemorySpace.VMEM),
            )(xi, b)

            out = out.reshape(N, Ho, Wo, Cout)
            return jnp.transpose(out, (0, 3, 1, 2))                       # back to NCHW

        return b_mat, jax.jit(forward)

    def __call__(self, x_nchw):
        H, W = x_nchw.shape[2], x_nchw.shape[3]
        key = (H, W, x_nchw.dtype)
        if key not in self._cache:
            self._cache[key] = self._build(H, W, x_nchw.dtype)
        b_mat, fwd = self._cache[key]
        return fwd(x_nchw, b_mat)


def _reference(x_nchw, dw_weight, pw_weight, *, padding=1):
    """Pure-JAX reference (lax conv) for correctness checking."""
    N, C, H, W = x_nchw.shape
    x = jnp.transpose(x_nchw, (0, 2, 3, 1))
    dn = ("NHWC", "HWIO", "NHWC")
    dw_hwio = jnp.transpose(dw_weight, (2, 3, 1, 0))                      # (KH, KW, 1, C)
    y = jax.lax.conv_general_dilated(
        x, dw_hwio, (1, 1), [(padding, padding), (padding, padding)],
        dimension_numbers=dn, feature_group_count=C)
    pw_hwio = jnp.transpose(pw_weight, (2, 3, 1, 0))                      # (1, 1, C, Cout)
    o = jax.lax.conv_general_dilated(y, pw_hwio, (1, 1), "VALID", dimension_numbers=dn)
    return jnp.transpose(o, (0, 3, 1, 2))


if __name__ == "__main__":
    # DepthwiseSeparableConv2d(in_channels=4, d_j=64, kernel_size=3, stride=1,
    #                          padding=1, bias=False)
    N, C, H, W = 2, 4, 16, 16
    KH = KW = 3
    d_j = 64

    key = jax.random.PRNGKey(0)
    kx, kd, kp = jax.random.split(key, 3)
    x = jax.random.normal(kx, (N, C, H, W), dtype=jnp.float32)
    dw_weight = jax.random.normal(kd, (C, 1, KH, KW), dtype=jnp.float32) * 0.1
    pw_weight = jax.random.normal(kp, (d_j, C, 1, 1), dtype=jnp.float32) * 0.1

    conv = DepthwiseSeparableConv2d(dw_weight, pw_weight, stride=1, padding=1)
    out = jax.block_until_ready(conv(x))

    ref = _reference(x, dw_weight, pw_weight, padding=1)
    assert out.shape == (N, d_j, H, W)
    assert jnp.allclose(out, ref, atol=1e-4, rtol=1e-4)

    print("KERNEL_OK")
</pallas_src>

<mosaic_0001>
module attributes {stable_mosaic.version = 11 : i64} {
  func.func @_dsconv_kernel(%arg0: memref<32x256xf32, #tpu.memory_space<vmem>>, %arg1: memref<256x1024xf32, #tpu.memory_space<vmem>>, %arg2: memref<32x1024xf32, #tpu.memory_space<vmem>>) attributes {dimension_semantics = [], scalar_prefetch = 0 : i64, scratch_operands = 0 : i64, tpu.core_type = #tpu.core_type<tc>} {
    %c0 = arith.constant 0 : index
    %c0_0 = arith.constant 0 : index
    %0 = vector.load %arg0[%c0, %c0_0] : memref<32x256xf32, #tpu.memory_space<vmem>>, vector<32x256xf32>
    %c0_1 = arith.constant 0 : index
    %c0_2 = arith.constant 0 : index
    %1 = vector.load %arg1[%c0_1, %c0_2] : memref<256x1024xf32, #tpu.memory_space<vmem>>, vector<256x1024xf32>
    %cst = arith.constant dense<0.000000e+00> : vector<32x1024xf32>
    %2 = tpu.matmul %0, %1, %cst {dimension_numbers = #tpu.dot_dimension_numbers<[1], [0], [0], [1], [0, 0, 1, 1], [], []>} : vector<32x256xf32>, vector<256x1024xf32>, vector<32x1024xf32> -> vector<32x1024xf32>
    %c0_3 = arith.constant 0 : index
    %c0_4 = arith.constant 0 : index
    %3 = vector.load %arg2[%c0_3, %c0_4] : memref<32x1024xf32, #tpu.memory_space<vmem>>, vector<32x1024xf32>
    tpu.vector_store %arg2[%c0_3, %c0_4], %2 {strides = array<i32>} : memref<32x1024xf32, #tpu.memory_space<vmem>>, vector<32x1024xf32>,
    return
  }
}

</mosaic_0001>

<llo_original>
// kernel: forward.1
$region0: #{forward.1}
  #allocation0 [shape = 'u32[]', space=smem, size = 0x4, offset = 0x4, fixed_abs, tag = 'smem constant byte address 0x4 - core index']
  #allocation1 [shape = 'u32[144,128]{1,0:T(1,128)}', space=vmem, size = 0x12000, scoped, tag = 'internal scratch']
  %s0 = inlined_call_operand.vmem [shape: f32[32,256], index: 0, kind: input, shape index: {}]
  %s1 = inlined_call_operand.vmem [shape: f32[256,1024], index: 1, kind: input, shape index: {}]
  %s2 = inlined_call_operand.vmem [shape: f32[32,1024], index: 2, kind: output, shape index: {}]
  %s3 = sld [smem:[#allocation0]]
  $region18: #{forward.1} parent=0
    _
  %s5 = ssub.s32 1, %s3
  %s6 = scalar_select 0, %s5, %s3
  // Predicated region
  $region2: #{forward.1} parent=0 // pred_check
    _
  $region3: #{forward.1} parent=0 // pred_check_branch
    %8 = sbr.rel (0) target = $region5
  $region4: #{forward.1} parent=0 // pred_region
    _
  $region5: #{forward.1} parent=0 // pred_fallthru
    _
  // Predicated region
  $region6: #{forward.1} parent=0 // pred_check
    _
  $region7: #{forward.1} parent=0 // pred_check_branch
    %10 = sbr.rel (0) target = $region9
  $region8: #{forward.1} parent=0 // pred_region
    _
  $region9: #{forward.1} parent=0 // pred_fallthru
    _
  %v11 = vld [vmem:[%s0] sm:$0xff]
  %v12 = vld [vmem:[%s0 + $0x8] sm:$0xff]
  %v13 = vld [vmem:[%s0 + $0x10] sm:$0xff]
  %v14 = vld [vmem:[%s0 + $0x18] sm:$0xff]
  %v15 = vld [vmem:[%s0 + $0x20] sm:$0xff]
  %v16 = vld [vmem:[%s0 + $0x28] sm:$0xff]
  %v17 = vld [vmem:[%s0 + $0x30] sm:$0xff]
  %v18 = vld [vmem:[%s0 + $0x38] sm:$0xff]
  %v19 = vld [vmem:[%s1] sm:$0xff]
  %v20 = vld [vmem:[%s1 + $0x8] sm:$0xff]
  %v21 = vld [vmem:[%s1 + $0x10] sm:$0xff]
  %v22 = vld [vmem:[%s1 + $0x18] sm:$0xff]
  %v23 = vld [vmem:[%s1 + $0x20] sm:$0xff]
  %v24 = vld [vmem:[%s1 + $0x28] sm:$0xff]
  %v25 = vld [vmem:[%s1 + $0x30] sm:$0xff]
  %v26 = vld [vmem:[%s1 + $0x38] sm:$0xff]
  %v27 = vld [vmem:[%s1 + $0x40] sm:$0xff]
  %v28 = vld [vmem:[%s1 + $0x48] sm:$0xff]
  %v29 = vld [vmem:[%s1 + $0x50] sm:$0xff]
  %v30 = vld [vmem:[%s1 + $0x58] sm:$0xff]
  %v31 = vld [vmem:[%s1 + $0x60] sm:$0xff]
  %v32 = vld [vmem:[%s1 + $0x68] sm:$0xff]
  %v33 = vld [vmem:[%s1 + $0x70] sm:$0xff]
  %v34 = vld [vmem:[%s1 + $0x78] sm:$0xff]
  %v35 = vld [vmem:[%s1 + $0x80] sm:$0xff]
  %v36 = vld [vmem:[%s1 + $0x88] sm:$0xff]
  %v37 = vld [vmem:[%s1 + $0x90] sm:$0xff]
  %v38 = vld [vmem:[%s1 + $0x98] sm:$0xff]
  %v39 = vld [vmem:[%s1 + $0xa0] sm:$0xff]
  %v40 = vld [vmem:[%s1 + $0xa8] sm:$0xff]
  %v41 = vld [vmem:[%s1 + $0xb0] sm:$0xff]
  %v42 = vld [vmem:[%s1 + $0xb8] sm:$0xff]
  %v43 = vld [vmem:[%s1 + $0xc0] sm:$0xff]
  %v44 = vld [vmem:[%s1 + $0xc8] sm:$0xff]
  %v45 = vld [vmem:[%s1 + $0xd0] sm:$0xff]
  %v46 = vld [vmem:[%s1 + $0xd8] sm:$0xff]
  %v47 = vld [vmem:[%s1 + $0xe0] sm:$0xff]
  %v48 = vld [vmem:[%s1 + $0xe8] sm:$0xff]
  %v49 = vld [vmem:[%s1 + $0xf0] sm:$0xff]
  %v50 = vld [vmem:[%s1 + $0xf8] sm:$0xff]
  %v51 = vld [vmem:[%s1 + $0x100] sm:$0xff]
  %v52 = vld [vmem:[%s1 + $0x108] sm:$0xff]
  %v53 = vld [vmem:[%s1 + $0x110] sm:$0xff]
  %v54 = vld [vmem:[%s1 + $0x118] sm:$0xff]
  %v55 = vld [vmem:[%s1 + $0x120] sm:$0xff]
  %v56 = vld [vmem:[%s1 + $0x128] sm:$0xff]
  %v57 = vld [vmem:[%s1 + $0x130] sm:$0xff]
  %v58 = vld [vmem:[%s1 + $0x138] sm:$0xff]
  %v59 = vld [vmem:[%s1 + $0x140] sm:$0xff]
  %v60 = vld [vmem:[%s1 + $0x148] sm:$0xff]
  %v61 = vld [vmem:[%s1 + $0x150] sm:$0xff]
  %v62 = vld [vmem:[%s1 + $0x158] sm:$0xff]
  %v63 = vld [vmem:[%s1 + $0x160] sm:$0xff]
  %v64 = vld [vmem:[%s1 + $0x168] sm:$0xff]
  %v65 = vld [vmem:[%s1 + $0x170] sm:$0xff]
  %v66 = vld [vmem:[%s1 + $0x178] sm:$0xff]
  %v67 = vld [vmem:[%s1 + $0x180] sm:$0xff]
  %v68 = vld [vmem:[%s1 + $0x188] sm:$0xff]
  %v69 = vld [vmem:[%s1 + $0x190] sm:$0xff]
  %v70 = vld [vmem:[%s1 + $0x198] sm:$0xff]
  %v71 = vld [vmem:[%s1 + $0x1a0] sm:$0xff]
  %v72 = vld [vmem:[%s1 + $0x1a8] sm:$0xff]
  %v73 = vld [vmem:[%s1 + $0x1b0] sm:$0xff]
  %v74 = vld [vmem:[%s1 + $0x1b8] sm:$0xff]
  %v75 = vld [vmem:[%s1 + $0x1c0] sm:$0xff]
  %v76 = vld [vmem:[%s1 + $0x1c8] sm:$0xff]
  %v77 = vld [vmem:[%s1 + $0x1d0] sm:$0xff]
  %v78 = vld [vmem:[%s1 + $0x1d8] sm:$0xff]
  %v79 = vld [vmem:[%s1 + $0x1e0] sm:$0xff]
  %v80 = vld [vmem:[%s1 + $0x1e8] sm:$0xff]
  %v81 = vld [vmem:[%s1 + $0x1f0] sm:$0xff]
  %v82 = vld [vmem:[%s1 + $0x1f8] sm:$0xff]
  %v83 = vld [vmem:[%s1 + $0x200] sm:$0xff]
  %v84 = vld [vmem:[%s1 + $0x208] sm:$0xff]
  %v85 = vld [vmem:[%s1 + $0x210] sm:$0xff]
  %v86 = vld [vmem:[%s1 + $0x218] sm:$0xff]
  %v87 = vld [vmem:[%s1 + $0x220] sm:$0xff]
  %v88 = vld [vmem:[%s1 + $0x228] sm:$0xff]
  %v89 = vld [vmem:[%s1 + $0x230] sm:$0xff]
  %v90 = vld [vmem:[%s1 + $0x238] sm:$0xff]
  %v91 = vld [vmem:[%s1 + $0x240] sm:$0xff]
  %v92 = vld [vmem:[%s1 + $0x248] sm:$0xff]
  %v93 = vld [vmem:[%s1 + $0x250] sm:$0xff]
  %v94 = vld [vmem:[%s1 + $0x258] sm:$0xff]
  %v95 = vld [vmem:[%s1 + $0x260] sm:$0xff]
  %v96 = vld [vmem:[%s1 + $0x268] sm:$0xff]
  %v97 = vld [vmem:[%s1 + $0x270] sm:$0xff]
  %v98 = vld [vmem:[%s1 + $0x278] sm:$0xff]
  %v99 = vld [vmem:[%s1 + $0x280] sm:$0xff]
  %v100 = vld [vmem:[%s1 + $0x288] sm:$0xff]
  %v101 = vld [vmem:[%s1 + $0x290] sm:$0xff]
  %v102 = vld [vmem:[%s1 + $0x298] sm:$0xff]
  %v103 = vld [vmem:[%s1 + $0x2a0] sm:$0xff]
  %v104 = vld [vmem:[%s1 + $0x2a8] sm:$0xff]
  %v105 = vld [vmem:[%s1 + $0x2b0] sm:$0xff]
  %v106 = vld [vmem:[%s1 + $0x2b8] sm:$0xff]
  %v107 = vld [vmem:[%s1 + $0x2c0] sm:$0xff]
  %v108 = vld [vmem:[%s1 + $0x2c8] sm:$0xff]
  %v109 = vld [vmem:[%s1 + $0x2d0] sm:$0xff]
  %v110 = vld [vmem:[%s1 + $0x2d8] sm:$0xff]
  %v111 = vld [vmem:[%s1 + $0x2e0] sm:$0xff]
  %v112 = vld [vmem:[%s1 + $0x2e8] sm:$0xff]
  %v113 = vld [vmem:[%s1 + $0x2f0] sm:$0xff]
  %v114 = vld [vmem:[%s1 + $0x2f8] sm:$0xff]
  %v115 = vld [vmem:[%s1 + $0x300] sm:$0xff]
  %v116 = vld [vmem:[%s1 + $0x308] sm:$0xff]
  %v117 = vld [vmem:[%s1 + $0x310] sm:$0xff]
  %v118 = vld [vmem:[%s1 + $0x318] sm:$0xff]
  %v119 = vld [vmem:[%s1 + $0x320] sm:$0xff]
  %v120 = vld [vmem:[%s1 + $0x328] sm:$0xff]
  %v121 = vld [vmem:[%s1 + $0x330] sm:$0xff]
  %v122 = vld [vmem:[%s1 + $0x338] sm:$0xff]
  %v123 = vld [vmem:[%s1 + $0x340] sm:$0xff]
  %v124 = vld [vmem:[%s1 + $0x348] sm:$0xff]
  %v125 = vld [vmem:[%s1 + $0x350] sm:$0xff]
  %v126 = vld [vmem:[%s1 + $0x358] sm:$0xff]
  %v127 = vld [vmem:[%s1 + $0x360] sm:$0xff]
  %v128 = vld [vmem:[%s1 + $0x368] sm:$0xff]
  %v129 = vld [vmem:[%s1 + $0x370] sm:$0xff]
  %v130 = vld [vmem:[%s1 + $0x378] sm:$0xff]
  %v131 = vld [vmem:[%s1 + $0x380] sm:$0xff]
  %v132 = vld [vmem:[%s1 + $0x388] sm:$0xff]
  %v133 = vld [vmem:[%s1 + $0x390] sm:$0xff]
  %v134 = vld [vmem:[%s1 + $0x398] sm:$0xff]
  %v135 = vld [vmem:[%s1 + $0x3a0] sm:$0xff]
  %v136 = vld [vmem:[%s1 + $0x3a8] sm:$0xff]
  %v137 = vld [vmem:[%s1 + $0x3b0] sm:$0xff]
  %v138 = vld [vmem:[%s1 + $0x3b8] sm:$0xff]
  %v139 = vld [vmem:[%s1 + $0x3c0] sm:$0xff]
  %v140 = vld [vmem:[%s1 + $0x3c8] sm:$0xff]
  %v141 = vld [vmem:[%s1 + $0x3d0] sm:$0xff]
  %v142 = vld [vmem:[%s1 + $0x3d8] sm:$0xff]
  %v143 = vld [vmem:[%s1 + $0x3e0] sm:$0xff]
  %v144 = vld [vmem:[%s1 + $0x3e8] sm:$0xff]
  %v145 = vld [vmem:[%s1 + $0x3f0] sm:$0xff]
  %v146 = vld [vmem:[%s1 + $0x3f8] sm:$0xff]
  %v147 = vld [vmem:[%s1 + $0x400] sm:$0xff]
  %v148 = vld [vmem:[%s1 + $0x408] sm:$0xff]
  %v149 = vld [vmem:[%s1 + $0x410] sm:$0xff]
  %v150 = vld [vmem:[%s1 + $0x418] sm:$0xff]
  %v151 = vld [vmem:[%s1 + $0x420] sm:$0xff]
  %v152 = vld [vmem:[%s1 + $0x428] sm:$0xff]
  %v153 = vld [vmem:[%s1 + $0x430] sm:$0xff]
  %v154 = vld [vmem:[%s1 + $0x438] sm:$0xff]
  %v155 = vld [vmem:[%s1 + $0x440] sm:$0xff]
  %v156 = vld [vmem:[%s1 + $0x448] sm:$0xff]
  %v157 = vld [vmem:[%s1 + $0x450] sm:$0xff]
  %v158 = vld [vmem:[%s1 + $0x458] sm:$0xff]
  %v159 = vld [vmem:[%s1 + $0x460] sm:$0xff]
  %v160 = vld [vmem:[%s1 + $0x468] sm:$0xff]
  %v161 = vld [vmem:[%s1 + $0x470] sm:$0xff]
  %v162 = vld [vmem:[%s1 + $0x478] sm:$0xff]
  %v163 = vld [vmem:[%s1 + $0x480] sm:$0xff]
  %v164 = vld [vmem:[%s1 + $0x488] sm:$0xff]
  %v165 = vld [vmem:[%s1 + $0x490] sm:$0xff]
  %v166 = vld [vmem:[%s1 + $0x498] sm:$0xff]
  %v167 = vld [vmem:[%s1 + $0x4a0] sm:$0xff]
  %v168 = vld [vmem:[%s1 + $0x4a8] sm:$0xff]
  %v169 = vld [vmem:[%s1 + $0x4b0] sm:$0xff]
  %v170 = vld [vmem:[%s1 + $0x4b8] sm:$0xff]
  %v171 = vld [vmem:[%s1 + $0x4c0] sm:$0xff]
  %v172 = vld [vmem:[%s1 + $0x4c8] sm:$0xff]
  %v173 = vld [vmem:[%s1 + $0x4d0] sm:$0xff]
  %v174 = vld [vmem:[%s1 + $0x4d8] sm:$0xff]
  %v175 = vld [vmem:[%s1 + $0x4e0] sm:$0xff]
  %v176 = vld [vmem:[%s1 + $0x4e8] sm:$0xff]
  %v177 = vld [vmem:[%s1 + $0x4f0] sm:$0xff]
  %v178 = vld [vmem:[%s1 + $0x4f8] sm:$0xff]
  %v179 = vld [vmem:[%s1 + $0x500] sm:$0xff]
  %v180 = vld [vmem:[%s1 + $0x508] sm:$0xff]
  %v181 = vld [vmem:[%s1 + $0x510] sm:$0xff]
  %v182 = vld [vmem:[%s1 + $0x518] sm:$0xff]
  %v183 = vld [vmem:[%s1 + $0x520] sm:$0xff]
  %v184 = vld [vmem:[%s1 + $0x528] sm:$0xff]
  %v185 = vld [vmem:[%s1 + $0x530] sm:$0xff]
  %v186 = vld [vmem:[%s1 + $0x538] sm:$0xff]
  %v187 = vld [vmem:[%s1 + $0x540] sm:$0xff]
  %v188 = vld [vmem:[%s1 + $0x548] sm:$0xff]
  %v189 = vld [vmem:[%s1 + $0x550] sm:$0xff]
  %v190 = vld [vmem:[%s1 + $0x558] sm:$0xff]
  %v191 = vld [vmem:[%s1 + $0x560] sm:$0xff]
  %v192 = vld [vmem:[%s1 + $0x568] sm:$0xff]
  %v193 = vld [vmem:[%s1 + $0x570] sm:$0xff]
  %v194 = vld [vmem:[%s1 + $0x578] sm:$0xff]
  %v195 = vld [vmem:[%s1 + $0x580] sm:$0xff]
  %v196 = vld [vmem:[%s1 + $0x588] sm:$0xff]
  %v197 = vld [vmem:[%s1 + $0x590] sm:$0xff]
  %v198 = vld [vmem:[%s1 + $0x598] sm:$0xff]
  %v199 = vld [vmem:[%s1 + $0x5a0] sm:$0xff]
  %v200 = vld [vmem:[%s1 + $0x5a8] sm:$0xff]
  %v201 = vld [vmem:[%s1 + $0x5b0] sm:$0xff]
  %v202 = vld [vmem:[%s1 + $0x5b8] sm:$0xff]
  %v203 = vld [vmem:[%s1 + $0x5c0] sm:$0xff]
  %v204 = vld [vmem:[%s1 + $0x5c8] sm:$0xff]
  %v205 = vld [vmem:[%s1 + $0x5d0] sm:$0xff]
  %v206 = vld [vmem:[%s1 + $0x5d8] sm:$0xff]
  %v207 = vld [vmem:[%s1 + $0x5e0] sm:$0xff]
  %v208 = vld [vmem:[%s1 + $0x5e8] sm:$0xff]
  %v209 = vld [vmem:[%s1 + $0x5f0] sm:$0xff]
  %v210 = vld [vmem:[%s1 + $0x5f8] sm:$0xff]
  %v211 = vld [vmem:[%s1 + $0x600] sm:$0xff]
  %v212 = vld [vmem:[%s1 + $0x608] sm:$0xff]
  %v213 = vld [vmem:[%s1 + $0x610] sm:$0xff]
  %v214 = vld [vmem:[%s1 + $0x618] sm:$0xff]
  %v215 = vld [vmem:[%s1 + $0x620] sm:$0xff]
  %v216 = vld [vmem:[%s1 + $0x628] sm:$0xff]
  %v217 = vld [vmem:[%s1 + $0x630] sm:$0xff]
  %v218 = vld [vmem:[%s1 + $0x638] sm:$0xff]
  %v219 = vld [vmem:[%s1 + $0x640] sm:$0xff]
  %v220 = vld [vmem:[%s1 + $0x648] sm:$0xff]
  %v221 = vld [vmem:[%s1 + $0x650] sm:$0xff]
  %v222 = vld [vmem:[%s1 + $0x658] sm:$0xff]
  %v223 = vld [vmem:[%s1 + $0x660] sm:$0xff]
  %v224 = vld [vmem:[%s1 + $0x668] sm:$0xff]
  %v225 = vld [vmem:[%s1 + $0x670] sm:$0xff]
  %v226 = vld [vmem:[%s1 + $0x678] sm:$0xff]
  %v227 = vld [vmem:[%s1 + $0x680] sm:$0xff]
  %v228 = vld [vmem:[%s1 + $0x688] sm:$0xff]
  %v229 = vld [vmem:[%s1 + $0x690] sm:$0xff]
  %v230 = vld [vmem:[%s1 + $0x698] sm:$0xff]
  %v231 = vld [vmem:[%s1 + $0x6a0] sm:$0xff]
  %v232 = vld [vmem:[%s1 + $0x6a8] sm:$0xff]
  %v233 = vld [vmem:[%s1 + $0x6b0] sm:$0xff]
  %v234 = vld [vmem:[%s1 + $0x6b8] sm:$0xff]
  %v235 = vld [vmem:[%s1 + $0x6c0] sm:$0xff]
  %v236 = vld [vmem:[%s1 + $0x6c8] sm:$0xff]
  %v237 = vld [vmem:[%s1 + $0x6d0] sm:$0xff]
  %v238 = vld [vmem:[%s1 + $0x6d8] sm:$0xff]
  %v239 = vld [vmem:[%s1 + $0x6e0] sm:$0xff]
  %v240 = vld [vmem:[%s1 + $0x6e8] sm:$0xff]
  %v241 = vld [vmem:[%s1 + $0x6f0] sm:$0xff]
  %v242 = vld [vmem:[%s1 + $0x6f8] sm:$0xff]
  %v243 = vld [vmem:[%s1 + $0x700] sm:$0xff]
  %v244 = vld [vmem:[%s1 + $0x708] sm:$0xff]
  %v245 = vld [vmem:[%s1 + $0x710] sm:$0xff]
  %v246 = vld [vmem:[%s1 + $0x718] sm:$0xff]
  %v247 = vld [vmem:[%s1 + $0x720] sm:$0xff]
  %v248 = vld [vmem:[%s1 + $0x728] sm:$0xff]
  %v249 = vld [vmem:[%s1 + $0x730] sm:$0xff]
  %v250 = vld [vmem:[%s1 + $0x738] sm:$0xff]
  %v251 = vld [vmem:[%s1 + $0x740] sm:$0xff]
  %v252 = vld [vmem:[%s1 + $0x748] sm:$0xff]
  %v253 = vld [vmem:[%s1 + $0x750] sm:$0xff]
  %v254 = vld [vmem:[%s1 + $0x758] sm:$0xff]
  %v255 = vld [vmem:[%s1 + $0x760] sm:$0xff]
  %v256 = vld [vmem:[%s1 + $0x768] sm:$0xff]
  %v257 = vld [vmem:[%s1 + $0x770] sm:$0xff]
  %v258 = vld [vmem:[%s1 + $0x778] sm:$0xff]
  %v259 = vld [vmem:[%s1 + $0x780] sm:$0xff]
  %v260 = vld [vmem:[%s1 + $0x788] sm:$0xff]
  %v261 = vld [vmem:[%s1 + $0x790] sm:$0xff]
  %v262 = vld [vmem:[%s1 + $0x798] sm:$0xff]
  %v263 = vld [vmem:[%s1 + $0x7a0] sm:$0xff]
  %v264 = vld [vmem:[%s1 + $0x7a8] sm:$0xff]
  %v265 = vld [vmem:[%s1 + $0x7b0] sm:$0xff]
  %v266 = vld [vmem:[%s1 + $0x7b8] sm:$0xff]
  %v267 = vld [vmem:[%s1 + $0x7c0] sm:$0xff]
  %v268 = vld [vmem:[%s1 + $0x7c8] sm:$0xff]
  %v269 = vld [vmem:[%s1 + $0x7d0] sm:$0xff]
  %v270 = vld [vmem:[%s1 + $0x7d8] sm:$0xff]
  %v271 = vld [vmem:[%s1 + $0x7e0] sm:$0xff]
  %v272 = vld [vmem:[%s1 + $0x7e8] sm:$0xff]
  %v273 = vld [vmem:[%s1 + $0x7f0] sm:$0xff]
  %v274 = vld [vmem:[%s1 + $0x7f8] sm:$0xff]
  %275 = vmatprep.subr.mxu0 %v20
  %276 = vmatpush1.msra.mxu0 %v19
  %277 = vmatprep.subr.mxu0 %v28
  %278 = vmatpush1.msra.mxu0 %v27
  %279 = vmatprep.subr.mxu0 %v36
  %280 = vmatpush1.msra.mxu0 %v35
  %281 = vmatprep.subr.mxu0 %v44
  %282 = vmatpush1.msra.mxu0 %v43
  %283 = vmatprep.subr.mxu0 %v52
  %284 = vmatpush1.msra.mxu0 %v51
  %285 = vmatprep.subr.mxu0 %v60
  %286 = vmatpush1.msra.mxu0 %v59
  %287 = vmatprep.subr.mxu0 %v68
  %288 = vmatpush1.msra.mxu0 %v67
  %289 = vmatprep.subr.mxu0 %v76
  %290 = vmatpush1.msra.mxu0 %v75
  %291 = vmatprep.subr.mxu0 %v84
  %292 = vmatpush1.msra.mxu0 %v83
  %293 = vmatprep.subr.mxu0 %v92
  %294 = vmatpush1.msra.mxu0 %v91
  %295 = vmatprep.subr.mxu0 %v100
  %296 = vmatpush1.msra.mxu0 %v99
  %297 = vmatprep.subr.mxu0 %v108
  %298 = vmatpush1.msra.mxu0 %v107
  %299 = vmatprep.subr.mxu0 %v116
  %300 = vmatpush1.msra.mxu0 %v115
  %301 = vmatprep.subr.mxu0 %v124
  %302 = vmatpush1.msra.mxu0 %v123
  %303 = vmatprep.subr.mxu0 %v132
  %304 = vmatpush1.msra.mxu0 %v131
  %305 = vmatprep.subr.mxu0 %v140
  %306 = vmatpush1.msra.mxu0 %v139
  %307 = vmatprep.subr.mxu0 %v148
  %308 = vmatpush1.msra.mxu0 %v147
  %309 = vmatprep.subr.mxu0 %v156
  %310 = vmatpush1.msra.mxu0 %v155
  %311 = vmatprep.subr.mxu0 %v164
  %312 = vmatpush1.msra.mxu0 %v163
  %313 = vmatprep.subr.mxu0 %v172
  %314 = vmatpush1.msra.mxu0 %v171
  %315 = vmatprep.subr.mxu0 %v180
  %316 = vmatpush1.msra.mxu0 %v179
  %317 = vmatprep.subr.mxu0 %v188
  %318 = vmatpush1.msra.mxu0 %v187
  %319 = vmatprep.subr.mxu0 %v196
  %320 = vmatpush1.msra.mxu0 %v195
  %321 = vmatprep.subr.mxu0 %v204
  %322 = vmatpush1.msra.mxu0 %v203
  %323 = vmatprep.subr.mxu0 %v212
  %324 = vmatpush1.msra.mxu0 %v211
  %325 = vmatprep.subr.mxu0 %v220
  %326 = vmatpush1.msra.mxu0 %v219
  %327 = vmatprep.subr.mxu0 %v228
  %328 = vmatpush1.msra.mxu0 %v227
  %329 = vmatprep.subr.mxu0 %v236
  %330 = vmatpush1.msra.mxu0 %v235
  %331 = vmatprep.subr.mxu0 %v244
  %332 = vmatpush1.msra.mxu0 %v243
  %333 = vmatprep.subr.mxu0 %v252
  %334 = vmatpush1.msra.mxu0 %v251
  %335 = vmatprep.subr.mxu0 %v260
  %336 = vmatpush1.msra.mxu0 %v259
  %337 = vmatprep.subr.mxu0 %v268
  %338 = vmatpush1.msra.mxu0 %v267
  %339 = vmatprep.mubr.f32.mxu0 %v12
  %340 = vmatmul.mubr.f32.gmra.mrb[0].mxu0 %v11
  %v341 = vpop.f32.mrb[0].mxu0
  %v342 = vadd.f32 0.0, %v341
  %v343 = vpop.f32.mrb[0].mxu0
  %v344 = vadd.f32 0.0, %v343
  %345 = vmatprep.mubr.f32.mxu0 %v14
  %346 = vmatmul.mubr.f32.gmra.mrb[0].mxu0 %v13
  %v347 = vpop.f32.mrb[0].mxu0
  %v348 = vadd.f32 0.0, %v347
  %v349 = vpop.f32.mrb[0].mxu0
  %v350 = vadd.f32 0.0, %v349
  %351 = vmatprep.mubr.f32.mxu0 %v16
  %352 = vmatmul.mubr.f32.gmra.mrb[0].mxu0 %v15
  %v353 = vpop.f32.mrb[0].mxu0
  %v354 = vadd.f32 0.0, %v353
  %v355 = vpop.f32.mrb[0].mxu0
  %v356 = vadd.f32 0.0, %v355
  %357 = vmatprep.mubr.f32.mxu0 %v18
  %358 = vmatmul.mubr.f32.gmra.mrb[0].mxu0 %v17
  %v359 = vpop.f32.mrb[0].mxu0
  %v360 = vadd.f32 0.0, %v359
  %v361 = vpop.f32.mrb[0].mxu0
  %v362 = vadd.f32 0.0, %v361
  %363 = vdwg.mxu0
  %364 = vmatprep.subr.mxu0 %v22
  %365 = vmatpush1.msra.mxu0 %v21
  %366 = vmatprep.subr.mxu0 %v30
  %367 = vmatpush1.msra.mxu0 %v29
  %368 = vmatprep.subr.mxu0 %v38
  %369 = vmatpush1.msra.mxu0 %v37
  %370 = vmatprep.subr.mxu0 %v46
  %371 = vmatpush1.msra.mxu0 %v45
  %372 = vmatprep.subr.mxu0 %v54
  %373 = vmatpush1.msra.mxu0 %v53
  %374 = vmatprep.subr.mxu0 %v62
  %375 = vmatpush1.msra.mxu0 %v61
  %376 = vmatprep.subr.mxu0 %v70
  %377 = vmatpush1.msra.mxu0 %v69
  %378 = vmatprep.subr.mxu0 %v78
  %379 = vmatpush1.msra.mxu0 %v77
  %380 = vmatprep.subr.mxu0 %v86
  %381 = vmatpush1.msra.mxu0 %v85
  %382 = vmatprep.subr.mxu0 %v94
  %383 = vmatpush1.msra.mxu0 %v93
  %384 = vmatprep.subr.mxu0 %v102
  %385 = vmatpush1.msra.mxu0 %v101
  %386 = vmatprep.subr.mxu0 %v110
  %387 = vmatpush1.msra.mxu0 %v109
  %388 = vmatprep.subr.mxu0 %v118
  %389 = vmatpush1.msra.mxu0 %v117
  %390 = vmatprep.subr.mxu0 %v126
  %391 = vmatpush1.msra.mxu0 %v125
  %392 = vmatprep.subr.mxu0 %v134
  %393 = vmatpush1.msra.mxu0 %v133
  %394 = vmatprep.subr.mxu0 %v142
  %395 = vmatpush1.msra.mxu0 %v141
  %396 = vmatprep.subr.mxu0 %v150
  %397 = vmatpush1.msra.mxu0 %v149
  %398 = vmatprep.subr.mxu0 %v158
  %399 = vmatpush1.msra.mxu0 %v157
  %400 = vmatprep.subr.mxu0 %v166
  %401 = vmatpush1.msra.mxu0 %v165
  %402 = vmatprep.subr.mxu0 %v174
  %403 = vmatpush1.msra.mxu0 %v173
  %404 = vmatprep.subr.mxu0 %v182
  %405 = vmatpush1.msra.mxu0 %v181
  %406 = vmatprep.subr.mxu0 %v190
  %407 = vmatpush1.msra.mxu0 %v189
  %408 = vmatprep.subr.mxu0 %v198
  %409 = vmatpush1.msra.mxu0 %v197
  %410 = vmatprep.subr.mxu0 %v206
  %411 = vmatpush1.msra.mxu0 %v205
  %412 = vmatprep.subr.mxu0 %v214
  %413 = vmatpush1.msra.mxu0 %v213
  %414 = vmatprep.subr.mxu0 %v222
  %415 = vmatpush1.msra.mxu0 %v221
  %416 = vmatprep.subr.mxu0 %v230
  %417 = vmatpush1.msra.mxu0 %v229
  %418 = vmatprep.subr.mxu0 %v238
  %419 = vmatpush1.msra.mxu0 %v237
  %420 = vmatprep.subr.mxu0 %v246
  %421 = vmatpush1.msra.mxu0 %v245
  %422 = vmatprep.subr.mxu0 %v254
  %423 = vmatpush1.msra.mxu0 %v253
  %424 = vmatprep.subr.mxu0 %v262
  %425 = vmatpush1.msra.mxu0 %v261
  %426 = vmatprep.subr.mxu0 %v270
  %427 = vmatpush1.msra.mxu0 %v269
  %428 = vmatprep.mubr.f32.mxu0 %v12
  %429 = vmatmul.mubr.f32.gmra.mrb[0].mxu0 %v11
  %v430 = vpop.f32.mrb[0].mxu0
  %v431 = vadd.f32 0.0, %v430
  %v432 = vpop.f32.mrb[0].mxu0
  %v433 = vadd.f32 0.0, %v432
  %434 = vmatprep.mubr.f32.mxu0 %v14
  %435 = vmatmul.mubr.f32.gmra.mrb[0].mxu0 %v13
  %v436 = vpop.f32.mrb[0].mxu0
  %v437 = vadd.f32 0.0, %v436
  %v438 = vpop.f32.mrb[0].mxu0
  %v439 = vadd.f32 0.0, %v438
  %440 = vmatprep.mubr.f32.mxu0 %v16
  %441 = vmatmul.mubr.f32.gmra.mrb[0].mxu0 %v15
  %v442 = vpop.f32.mrb[0].mxu0
  %v443 = vadd.f32 0.0, %v442
  %v444 = vpop.f32.mrb[0].mxu0
  %v445 = vadd.f32 0.0, %v444
  %446 = vmatprep.mubr.f32.mxu0 %v18
  %447 = vmatmul.mubr.f32.gmra.mrb[0].mxu0 %v17
  %v448 = vpop.f32.mrb[0].mxu0
  %v449 = vadd.f32 0.0, %v448
  %v450 = vpop.f32.mrb[0].mxu0
  %v451 = vadd.f32 0.0, %v450
  %452 = vdwg.mxu0
  %453 = vmatprep.subr.mxu0 %v24
  %454 = vmatpush1.msra.mxu0 %v23
  %455 = vmatprep.subr.mxu0 %v32
  %456 = vmatpush1.msra.mxu0 %v31
  %457 = vmatprep.subr.mxu0 %v40
  %458 = vmatpush1.msra.mxu0 %v39
  %459 = vmatprep.subr.mxu0 %v48
  %460 = vmatpush1.msra.mxu0 %v47
  %461 = vmatprep.subr.mxu0 %v56
  %462 = vmatpush1.msra.mxu0 %v55
  %463 = vmatprep.subr.mxu0 %v64
  %464 = vmatpush1.msra.mxu0 %v63
  %465 = vmatprep.subr.mxu0 %v72
  %466 = vmatpush1.msra.mxu0 %v71
  %467 = vmatprep.subr.mxu0 %v80
  %468 = vmatpush1.msra.mxu0 %v79
  %469 = vmatprep.subr.mxu0 %v88
  %470 = vmatpush1.msra.mxu0 %v87
  %471 = vmatprep.subr.mxu0 %v96
  %472 = vmatpush1.msra.mxu0 %v95
  %473 = vmatprep.subr.mxu0 %v104
  %474 = vmatpush1.msra.mxu0 %v103
  %475 = vmatprep.subr.mxu0 %v112
  %476 = vmatpush1.msra.mxu0 %v111
  %477 = vmatprep.subr.mxu0 %v120
  %478 = vmatpush1.msra.mxu0 %v119
  %479 = vmatprep.subr.mxu0 %v128
  %480 = vmatpush1.msra.mxu0 %v127
  %481 = vmatprep.subr.mxu0 %v136
  %482 = vmatpush1.msra.mxu0 %v135
  %483 = vmatprep.subr.mxu0 %v144
  %484 = vmatpush1.msra.mxu0 %v143
  %485 = vmatprep.subr.mxu0 %v152
  %486 = vmatpush1.msra.mxu0 %v151
  %487 = vmatprep.subr.mxu0 %v160
  %488 = vmatpush1.msra.mxu0 %v159
  %489 = vmatprep.subr.mxu0 %v168
  %490 = vmatpush1.msra.mxu0 %v167
  %491 = vmatprep.subr.mxu0 %v176
  %492 = vmatpush1.msra.mxu0 %v175
  %493 = vmatprep.subr.mxu0 %v184
  %494 = vmatpush1.msra.mxu0 %v183
  %495 = vmatprep.subr.mxu0 %v192
  %496 = vmatpush1.msra.mxu0 %v191
  %497 = vmatprep.subr.mxu0 %v200
  %498 = vmatpush1.msra.mxu0 %v199
  %499 = vmatprep.subr.mxu0 %v208
  %500 = vmatpush1.msra.mxu0 %v207
  %501 = vmatprep.subr.mxu0 %v216
  %502 = vmatpush1.msra.mxu0 %v215
  %503 = vmatprep.subr.mxu0 %v224
  %504 = vmatpush1.msra.mxu0 %v223
  %505 = vmatprep.subr.mxu0 %v232
  %506 = vmatpush1.msra.mxu0 %v231
  %507 = vmatprep.subr.mxu0 %v240
  %508 = vmatpush1.msra.mxu0 %v239
  %509 = vmatprep.subr.mxu0 %v248
  %510 = vmatpush1.msra.mxu0 %v247
  %511 = vmatprep.subr.mxu0 %v256
  %512 = vmatpush1.msra.mxu0 %v255
  %513 = vmatprep.subr.mxu0 %v264
  %514 = vmatpush1.msra.mxu0 %v263
  %515 = vmatprep.subr.mxu0 %v272
  %516 = vmatpush1.msra.mxu0 %v271
  %517 = vmatprep.mubr.f32.mxu0 %v12
  %518 = vmatmul.mubr.f32.gmra.mrb[0].mxu0 %v11
  %v519 = vpop.f32.mrb[0].mxu0
  %v520 = vadd.f32 0.0, %v519
  %v521 = vpop.f32.mrb[0].mxu0
  %v522 = vadd.f32 0.0, %v521
  %523 = vmatprep.mubr.f32.mxu0 %v14
  %524 = vmatmul.mubr.f32.gmra.mrb[0].mxu0 %v13
  %v525 = vpop.f32.mrb[0].mxu0
  %v526 = vadd.f32 0.0, %v525
  %v527 = vpop.f32.mrb[0].mxu0
  %v528 = vadd.f32 0.0, %v527
  %529 = vmatprep.mubr.f32.mxu0 %v16
  %530 = vmatmul.mubr.f32.gmra.mrb[0].mxu0 %v15
  %v531 = vpop.f32.mrb[0].mxu0
  %v532 = vadd.f32 0.0, %v531
  %v533 = vpop.f32.mrb[0].mxu0
  %v534 = vadd.f32 0.0, %v533
  %535 = vmatprep.mubr.f32.mxu0 %v18
  %536 = vmatmul.mubr.f32.gmra.mrb[0].mxu0 %v17
  %v537 = vpop.f32.mrb[0].mxu0
  %v538 = vadd.f32 0.0, %v537
  %v539 = vpop.f32.mrb[0].mxu0
  %v540 = vadd.f32 0.0, %v539
  %541 = vdwg.mxu0
  %542 = vmatprep.subr.mxu0 %v26
  %543 = vmatpush1.msra.mxu0 %v25
  %544 = vmatprep.subr.mxu0 %v34
  %545 = vmatpush1.msra.mxu0 %v33
  %546 = vmatprep.subr.mxu0 %v42
  %547 = vmatpush1.msra.mxu0 %v41
  %548 = vmatprep.subr.mxu0 %v50
  %549 = vmatpush1.msra.mxu0 %v49
  %550 = vmatprep.subr.mxu0 %v58
  %551 = vmatpush1.msra.mxu0 %v57
  %552 = vmatprep.subr.mxu0 %v66
  %553 = vmatpush1.msra.mxu0 %v65
  %554 = vmatprep.subr.mxu0 %v74
  %555 = vmatpush1.msra.mxu0 %v73
  %556 = vmatprep.subr.mxu0 %v82
  %557 = vmatpush1.msra.mxu0 %v81
  %558 = vmatprep.subr.mxu0 %v90
  %559 = vmatpush1.msra.mxu0 %v89
  %560 = vmatprep.subr.mxu0 %v98
  %561 = vmatpush1.msra.mxu0 %v97
  %562 = vmatprep.subr.mxu0 %v106
  %563 = vmatpush1.msra.mxu0 %v105
  %564 = vmatprep.subr.mxu0 %v114
  %565 = vmatpush1.msra.mxu0 %v113
  %566 = vmatprep.subr.mxu0 %v122
  %567 = vmatpush1.msra.mxu0 %v121
  %568 = vmatprep.subr.mxu0 %v130
  %569 = vmatpush1.msra.mxu0 %v129
  %570 = vmatprep.subr.mxu0 %v138
  %571 = vmatpush1.msra.mxu0 %v137
  %572 = vmatprep.subr.mxu0 %v146
  %573 = vmatpush1.msra.mxu0 %v145
  %574 = vmatprep.subr.mxu0 %v154
  %575 = vmatpush1.msra.mxu0 %v153
  %576 = vmatprep.subr.mxu0 %v162
  %577 = vmatpush1.msra.mxu0 %v161
  %578 = vmatprep.subr.mxu0 %v170
  %579 = vmatpush1.msra.mxu0 %v169
  %580 = vmatprep.subr.mxu0 %v178
  %581 = vmatpush1.msra.mxu0 %v177
  %582 = vmatprep.subr.mxu0 %v186
  %583 = vmatpush1.msra.mxu0 %v185
  %584 = vmatprep.subr.mxu0 %v194
  %585 = vmatpush1.msra.mxu0 %v193
  %586 = vmatprep.subr.mxu0 %v202
  %587 = vmatpush1.msra.mxu0 %v201
  %588 = vmatprep.subr.mxu0 %v210
  %589 = vmatpush1.msra.mxu0 %v209
  %590 = vmatprep.subr.mxu0 %v218
  %591 = vmatpush1.msra.mxu0 %v217
  %592 = vmatprep.subr.mxu0 %v226
  %593 = vmatpush1.msra.mxu0 %v225
  %594 = vmatprep.subr.mxu0 %v234
  %595 = vmatpush1.msra.mxu0 %v233
  %596 = vmatprep.subr.mxu0 %v242
  %597 = vmatpush1.msra.mxu0 %v241
  %598 = vmatprep.subr.mxu0 %v250
  %599 = vmatpush1.msra.mxu0 %v249
  %600 = vmatprep.subr.mxu0 %v258
  %601 = vmatpush1.msra.mxu0 %v257
  %602 = vmatprep.subr.mxu0 %v266
  %603 = vmatpush1.msra.mxu0 %v265
  %604 = vmatprep.subr.mxu0 %v274
  %605 = vmatpush1.msra.mxu0 %v273
  %606 = vmatprep.mubr.f32.mxu0 %v12
  %607 = vmatmul.mubr.f32.gmra.mrb[0].mxu0 %v11
  %v608 = vpop.f32.mrb[0].mxu0
  %v609 = vadd.f32 0.0, %v608
  %v610 = vpop.f32.mrb[0].mxu0
  %v611 = vadd.f32 0.0, %v610
  %612 = vmatprep.mubr.f32.mxu0 %v14
  %613 = vmatmul.mubr.f32.gmra.mrb[0].mxu0 %v13
  %v614 = vpop.f32.mrb[0].mxu0
  %v615 = vadd.f32 0.0, %v614
  %v616 = vpop.f32.mrb[0].mxu0
  %v617 = vadd.f32 0.0, %v616
  %618 = vmatprep.mubr.f32.mxu0 %v16
  %619 = vmatmul.mubr.f32.gmra.mrb[0].mxu0 %v15
  %v620 = vpop.f32.mrb[0].mxu0
  %v621 = vadd.f32 0.0, %v620
  %v622 = vpop.f32.mrb[0].mxu0
  %v623 = vadd.f32 0.0, %v622
  %624 = vmatprep.mubr.f32.mxu0 %v18
  %625 = vmatmul.mubr.f32.gmra.mrb[0].mxu0 %v17
  %v626 = vpop.f32.mrb[0].mxu0
  %v627 = vadd.f32 0.0, %v626
  %v628 = vpop.f32.mrb[0].mxu0
  %v629 = vadd.f32 0.0, %v628
  %630 = vdwg.mxu0
  %631 = vst [vmem:[%s2] sm:$0xff] %v342
  %632 = vst [vmem:[%s2 + $0x8] sm:$0xff] %v344
  %633 = vst [vmem:[%s2 + $0x10] sm:$0xff] %v431
  %634 = vst [vmem:[%s2 + $0x18] sm:$0xff] %v433
  %635 = vst [vmem:[%s2 + $0x20] sm:$0xff] %v520
  %636 = vst [vmem:[%s2 + $0x28] sm:$0xff] %v522
  %637 = vst [vmem:[%s2 + $0x30] sm:$0xff] %v609
  %638 = vst [vmem:[%s2 + $0x38] sm:$0xff] %v611
  %639 = vst [vmem:[%s2 + $0x40] sm:$0xff] %v348
  %640 = vst [vmem:[%s2 + $0x48] sm:$0xff] %v350
  %641 = vst [vmem:[%s2 + $0x50] sm:$0xff] %v437
  %642 = vst [vmem:[%s2 + $0x58] sm:$0xff] %v439
  %643 = vst [vmem:[%s2 + $0x60] sm:$0xff] %v526
  %644 = vst [vmem:[%s2 + $0x68] sm:$0xff] %v528
  %645 = vst [vmem:[%s2 + $0x70] sm:$0xff] %v615
  %646 = vst [vmem:[%s2 + $0x78] sm:$0xff] %v617
  %647 = vst [vmem:[%s2 + $0x80] sm:$0xff] %v354
  %648 = vst [vmem:[%s2 + $0x88] sm:$0xff] %v356
  %649 = vst [vmem:[%s2 + $0x90] sm:$0xff] %v443
  %650 = vst [vmem:[%s2 + $0x98] sm:$0xff] %v445
  %651 = vst [vmem:[%s2 + $0xa0] sm:$0xff] %v532
  %652 = vst [vmem:[%s2 + $0xa8] sm:$0xff] %v534
  %653 = vst [vmem:[%s2 + $0xb0] sm:$0xff] %v621
  %654 = vst [vmem:[%s2 + $0xb8] sm:$0xff] %v623
  %655 = vst [vmem:[%s2 + $0xc0] sm:$0xff] %v360
  %656 = vst [vmem:[%s2 + $0xc8] sm:$0xff] %v362
  %657 = vst [vmem:[%s2 + $0xd0] sm:$0xff] %v449
  %658 = vst [vmem:[%s2 + $0xd8] sm:$0xff] %v451
  %659 = vst [vmem:[%s2 + $0xe0] sm:$0xff] %v538
  %660 = vst [vmem:[%s2 + $0xe8] sm:$0xff] %v540
  %661 = vst [vmem:[%s2 + $0xf0] sm:$0xff] %v627
  %662 = vst [vmem:[%s2 + $0xf8] sm:$0xff] %v629
  // Predicated region
  $region10: #{forward.1} parent=0 // pred_check
    _
  $region11: #{forward.1} parent=0 // pred_check_branch
    %664 = sbr.rel (0) target = $region13
  $region12: #{forward.1} parent=0 // pred_region
    _
  $region13: #{forward.1} parent=0 // pred_fallthru
    _
  // Predicated region
  $region14: #{forward.1} parent=0 // pred_check
    _
  $region15: #{forward.1} parent=0 // pred_check_branch
    %666 = sbr.rel (0) target = $region17
  $region16: #{forward.1} parent=0 // pred_region
    _
  $region17: #{forward.1} parent=0 // pred_fallthru
    _

</llo_original>
